<compile_context>
chip_gen: v5e
topology: v5e:2x2
jax: 0.10.0
libtpu: 0.0.40
codegen_flags: <defaults>
</compile_context>

<pallas_src>
import jax
import jax.numpy as jnp
from jax import lax
from jax.experimental import pallas as pl
from jax.experimental.pallas import tpu as pltpu


def _round_up(x, m):
    return ((x + m - 1) // m) * m


def _logistic_kernel_single_k(x_ref, w_ref, b_ref, o_ref):
    """Whole reduction fits in one K block: no accumulator scratch needed."""
    x = x_ref[...].astype(jnp.float32)   # mirrors X.to(torch.float)
    w = w_ref[...].astype(jnp.float32)
    logits = lax.dot_general(
        x, w,
        dimension_numbers=(((1,), (1,)), ((), ())),
        preferred_element_type=jnp.float32,
    ) + b_ref[...].astype(jnp.float32)
    o_ref[...] = jax.nn.sigmoid(logits).astype(o_ref.dtype)


def _logistic_kernel_multi_k(x_ref, w_ref, b_ref, o_ref, acc_ref):
    """Computes one (tm, tn) output tile; K (reduction) is the last grid axis."""
    k = pl.program_id(2)

    @pl.when(k == 0)
    def _():
        acc_ref[...] = jnp.zeros_like(acc_ref)

    # x tile: (tm, tk); w tile: (tn, tk). Contract the K dim of both so the
    # weight never needs a wrapper-side transpose (MXU handles trans-B).
    x = x_ref[...].astype(jnp.float32)   # mirrors X.to(torch.float)
    w = w_ref[...].astype(jnp.float32)
    acc_ref[...] += lax.dot_general(
        x, w,
        dimension_numbers=(((1,), (1,)), ((), ())),
        preferred_element_type=jnp.float32,
    )

    @pl.when(k == pl.num_programs(2) - 1)
    def _():
        logits = acc_ref[...] + b_ref[...].astype(jnp.float32)
        o_ref[...] = jax.nn.sigmoid(logits).astype(o_ref.dtype)


def classifier_forward(x, weight, bias, *, tm=256, tn=256, tk=256):
    """y = sigmoid(x @ weight.T + bias)

    x:      (B, I)  any float/int dtype (cast to f32 inside the kernel)
    weight: (O, I)  PyTorch nn.Linear layout
    bias:   (O,)
    returns (B, O) float32
    """
    B, I = x.shape
    O, I2 = weight.shape
    assert I == I2 and bias.shape == (O,)

    # Shrink tiles for small problems but keep the lane dim a multiple of 128
    # and the sublane dim a multiple of 8 (lane-dense, unmasked stores).
    tm = min(tm, _round_up(B, 8))
    tn = min(tn, _round_up(O, 128))
    tk = min(tk, _round_up(I, 128))

    Bp, Op, Ip = _round_up(B, tm), _round_up(O, tn), _round_up(I, tk)

    # Zero-pad to tiled extents: padded K contributes zero to the matmul;
    # padded M/N rows/cols are sliced off at the end.
    xp = x if (Bp == B and Ip == I) else jnp.pad(x, ((0, Bp - B), (0, Ip - I)))
    wp = weight if (Op == O and Ip == I) else jnp.pad(weight, ((0, Op - O), (0, Ip - I)))
    bp = (bias if Op == O else jnp.pad(bias, (0, Op - O))).reshape(1, Op)

    grid = (Bp // tm, Op // tn, Ip // tk)   # reduction (K) axis last
    single_k = grid[2] == 1

    itemsize = jnp.dtype(x.dtype).itemsize
    cost = pl.CostEstimate(
        flops=2 * Bp * Ip * Op,
        transcendentals=Bp * Op,  # sigmoid
        bytes_accessed=(Bp * Ip) * itemsize
        + (Op * Ip) * jnp.dtype(weight.dtype).itemsize
        + (Op + Bp * Op) * 4,
    )

    kernel = _logistic_kernel_single_k if single_k else _logistic_kernel_multi_k
    scratch = [] if single_k else [pltpu.VMEM((tm, tn), jnp.float32)]

    out = pl.pallas_call(
        kernel,
        out_shape=jax.ShapeDtypeStruct((Bp, Op), jnp.float32),
        grid_spec=pltpu.PrefetchScalarGridSpec(
            num_scalar_prefetch=0,
            grid=grid,
            in_specs=[
                pl.BlockSpec((tm, tk), lambda i, j, k: (i, k)),   # x
                pl.BlockSpec((tn, tk), lambda i, j, k: (j, k)),   # weight (O, I)
                pl.BlockSpec((1, tn), lambda i, j, k: (0, j)),    # bias row
            ],
            out_specs=pl.BlockSpec((tm, tn), lambda i, j, k: (i, j)),
            scratch_shapes=scratch,
        ),
        compiler_params=pltpu.CompilerParams(
            dimension_semantics=("parallel", "parallel", "arbitrary"),
        ),
        cost_estimate=cost,
    )(xp, wp, bp)

    return out[:B, :O] if (Bp != B or Op != O) else out


def _xavier_normal(key, out_units, in_units):
    # torch.nn.init.xavier_normal_: std = sqrt(2 / (fan_in + fan_out))
    std = (2.0 / (in_units + out_units)) ** 0.5
    return std * jax.random.normal(key, (out_units, in_units), dtype=jnp.float32)


if __name__ == "__main__":
    input_size = 32
    output_size = 16
    batch = 8

    key = jax.random.PRNGKey(0)
    kx, kw, kb = jax.random.split(key, 3)

    x = jax.random.normal(kx, (batch, input_size), dtype=jnp.float32)
    weight = _xavier_normal(kw, output_size, input_size)
    # nn.Linear default bias init: U(-1/sqrt(fan_in), 1/sqrt(fan_in))
    bound = 1.0 / (input_size ** 0.5)
    bias = jax.random.uniform(kb, (output_size,), minval=-bound, maxval=bound,
                              dtype=jnp.float32)

    y = classifier_forward(x, weight, bias)
    jax.block_until_ready(y)

    # Cross-check against plain JAX reference.
    ref = jax.nn.sigmoid(x @ weight.T + bias)
    assert y.shape == (batch, output_size)
    assert jnp.allclose(y, ref, atol=1e-5, rtol=1e-5), "mismatch vs reference"

    print("KERNEL_OK")
</pallas_src>

<mosaic_0001>
module attributes {stable_mosaic.version = 11 : i64} {
  func.func @_logistic_kernel_single_k(%arg0: i32, %arg1: i32, %arg2: i32, %arg3: memref<8x128xf32, #tpu.memory_space<vmem>>, %arg4: memref<128x128xf32, #tpu.memory_space<vmem>>, %arg5: memref<1x128xf32, #tpu.memory_space<vmem>>, %arg6: memref<8x128xf32, #tpu.memory_space<vmem>>) attributes {dimension_semantics = [#tpu.dimension_semantics<parallel>, #tpu.dimension_semantics<parallel>, #tpu.dimension_semantics<arbitrary>], iteration_bounds = array<i64: 1, 1, 1>, scalar_prefetch = 0 : i64, scratch_operands = 0 : i64, tpu.core_type = #tpu.core_type<tc>, window_params = [{transform_indices = @transform_0, window_bounds = array<i64: 8, 128>}, {transform_indices = @transform_1, window_bounds = array<i64: 128, 128>}, {transform_indices = @transform_2, window_bounds = array<i64: 1, 128>}, {transform_indices = @transform_3, window_bounds = array<i64: 8, 128>}]} {
    %c0 = arith.constant 0 : index
    %c0_0 = arith.constant 0 : index
    %0 = vector.load %arg3[%c0, %c0_0] : memref<8x128xf32, #tpu.memory_space<vmem>>, vector<8x128xf32>
    %c0_1 = arith.constant 0 : index
    %c0_2 = arith.constant 0 : index
    %1 = vector.load %arg4[%c0_1, %c0_2] : memref<128x128xf32, #tpu.memory_space<vmem>>, vector<128x128xf32>
    %cst = arith.constant dense<0.000000e+00> : vector<8x128xf32>
    %2 = tpu.matmul %0, %1, %cst {dimension_numbers = #tpu.dot_dimension_numbers<[1], [1], [0], [0], [0, 0, 1, 0], [], []>} : vector<8x128xf32>, vector<128x128xf32>, vector<8x128xf32> -> vector<8x128xf32>
    %c0_3 = arith.constant 0 : index
    %c0_4 = arith.constant 0 : index
    %3 = vector.load %arg5[%c0_3, %c0_4] : memref<1x128xf32, #tpu.memory_space<vmem>>, vector<1x128xf32>
    %4 = vector.broadcast %3 : vector<1x128xf32> to vector<8x128xf32>
    %5 = arith.addf %2, %4 : vector<8x128xf32>
    %6 = arith.negf %5 : vector<8x128xf32>
    %7 = math.exp %6 : vector<8x128xf32>
    %cst_5 = arith.constant 1.000000e+00 : f32
    %8 = vector.broadcast %cst_5 : f32 to vector<8x128xf32>
    %9 = arith.addf %8, %7 : vector<8x128xf32>
    %10 = arith.divf %8, %9 : vector<8x128xf32>
    %c0_6 = arith.constant 0 : index
    %c0_7 = arith.constant 0 : index
    %11 = vector.load %arg6[%c0_6, %c0_7] : memref<8x128xf32, #tpu.memory_space<vmem>>, vector<8x128xf32>
    tpu.vector_store %arg6[%c0_6, %c0_7], %10 {strides = array<i32>} : memref<8x128xf32, #tpu.memory_space<vmem>>, vector<8x128xf32>,
    return
  }
  func.func @transform_0(%arg0: i32, %arg1: i32, %arg2: i32) -> (i32, i32) {
    %c0_i32 = arith.constant 0 : i32
    return %arg0, %arg2 : i32, i32
  }
  func.func @transform_1(%arg0: i32, %arg1: i32, %arg2: i32) -> (i32, i32) {
    %c0_i32 = arith.constant 0 : i32
    return %arg1, %arg2 : i32, i32
  }
  func.func @transform_2(%arg0: i32, %arg1: i32, %arg2: i32) -> (i32, i32) {
    %c0_i32 = arith.constant 0 : i32
    %c0_i32_0 = arith.constant 0 : i32
    return %c0_i32, %arg1 : i32, i32
  }
  func.func @transform_3(%arg0: i32, %arg1: i32, %arg2: i32) -> (i32, i32) {
    %c0_i32 = arith.constant 0 : i32
    return %arg0, %arg1 : i32, i32
  }
}

</mosaic_0001>

<llo_original>
// kernel: tpu_custom_call.1
$region0: #{tpu_custom_call.1}
  #allocation0 [shape = 'u32[]', space=smem, size = 0x4, offset = 0x4, fixed_abs, tag = 'smem constant byte address 0x4 - core index']
  #allocation1 [shape = 'u32[72,128]{1,0:T(1,128)}', space=vmem, size = 0x9000, scoped, tag = 'internal scratch']
  %s0 = inlined_call_operand.hbm [shape: f32[8,128], index: 0, kind: input, shape index: {}]
  %s1 = inlined_call_operand.hbm [shape: f32[128,128], index: 1, kind: input, shape index: {}]
  %s2 = inlined_call_operand.vmem [shape: f32[1,128], index: 2, kind: input, shape index: {}]
  %s3 = inlined_call_operand.hbm [shape: f32[8,128], index: 3, kind: output, shape index: {}]
  %s4 = sld [smem:[#allocation0]]
  $region30: #{tpu_custom_call.1} parent=0
    _
  %s6 = ssub.s32 1, %s4
  %s7 = scalar_select 0, %s6, %s4
  $region1: #{tpu_custom_call.1} parent=0
    #allocation2 [shape = 'u8[4096]{0}', space=vmem, size = 0x1000, scoped, tag = 'input window, operand 0, single buffered']
    #allocation3 [shape = 's32[1]{0}', space=sflag, size = 0x4, scoped, tag = 'scoped memory for tpu_custom_call.1']
    #allocation4 [shape = 's32[1]{0}', space=sflag, size = 0x4, scoped, tag = 'scoped memory for tpu_custom_call.1']
    #allocation5 [shape = 'u8[65536]{0}', space=vmem, size = 0x10000, scoped, tag = 'input window, operand 1, single buffered']
    #allocation6 [shape = 's32[1]{0}', space=sflag, size = 0x4, scoped, tag = 'scoped memory for tpu_custom_call.1']
    #allocation7 [shape = 'u8[4096]{0}', space=vmem, size = 0x1000, scoped, tag = 'output window, operand 0, single buffered']
    %8 = vsyncpa [#allocation3], 0
    %9 = vsyncpa [#allocation6], 0
    %10 = vsyncpa [#allocation4], 0
    // Predicated region
    $region2: #{tpu_custom_call.1} parent=1 // pred_check
      _
    $region3: #{tpu_custom_call.1} parent=1 // pred_check_branch
      %12 = sbr.rel (0) target = $region5
    $region4: #{tpu_custom_call.1} parent=1 // pred_region
      %14 = vsyncadd [#allocation3], 0
      %s16 = sshll.u32 %s0, 4
      %s17 = int_to_ptr.hbm [resolvable:$true] %s16
      %s18 = sshll.u32 [#allocation2], 4
      %s19 = int_to_ptr.vmem [resolvable:$true] %s18
      %21 = dma.hbm_to_vmem [thread:$0]  %s17, 128, %s19, [#allocation3]
    $region5: #{tpu_custom_call.1} parent=1 // pred_fallthru
      _
    // Predicated region
    $region6: #{tpu_custom_call.1} parent=1 // pred_check
      _
    $region7: #{tpu_custom_call.1} parent=1 // pred_check_branch
      %23 = sbr.rel (0) target = $region9
    $region8: #{tpu_custom_call.1} parent=1 // pred_region
      %25 = vsyncadd [#allocation6], 0
      %s26 = sshll.u32 %s1, 4
      %s27 = int_to_ptr.hbm [resolvable:$true] %s26
      %s28 = sshll.u32 [#allocation5], 4
      %s29 = int_to_ptr.vmem [resolvable:$true] %s28
      %34 = dma.hbm_to_vmem [thread:$0]  %s27, 2048, %s29, [#allocation6], 128, 128, 8
    $region9: #{tpu_custom_call.1} parent=1 // pred_fallthru
      _
    // Predicated region
    $region10: #{tpu_custom_call.1} parent=1 // pred_check
      _
    $region11: #{tpu_custom_call.1} parent=1 // pred_check_branch
      %36 = sbr.rel (0) target = $region13
    $region12: #{tpu_custom_call.1} parent=1 // pred_region
      _
    $region13: #{tpu_custom_call.1} parent=1 // pred_fallthru
      _
    // Predicated region
    $region14: #{tpu_custom_call.1} parent=1 // pred_check
      _
    $region15: #{tpu_custom_call.1} parent=1 // pred_check_branch
      %38 = sbr.rel (0) target = $region17
    $region16: #{tpu_custom_call.1} parent=1 // pred_region
      %40 = dma.done [#allocation3], 128
    $region17: #{tpu_custom_call.1} parent=1 // pred_fallthru
      _
    // Predicated region
    $region18: #{tpu_custom_call.1} parent=1 // pred_check
      _
    $region19: #{tpu_custom_call.1} parent=1 // pred_check_branch
      %42 = sbr.rel (0) target = $region21
    $region20: #{tpu_custom_call.1} parent=1 // pred_region
      %44 = dma.done [#allocation6], 2048
    $region21: #{tpu_custom_call.1} parent=1 // pred_fallthru
      _
    %v45 = vld [vmem:[#allocation2] sm:$0xff]
    %v46 = vld [vmem:[#allocation5] sm:$0xff]
    %v47 = vld [vmem:[#allocation5 + $0x8] sm:$0xff]
    %v48 = vld [vmem:[#allocation5 + $0x10] sm:$0xff]
    %v49 = vld [vmem:[#allocation5 + $0x18] sm:$0xff]
    %v50 = vld [vmem:[#allocation5 + $0x20] sm:$0xff]
    %v51 = vld [vmem:[#allocation5 + $0x28] sm:$0xff]
    %v52 = vld [vmem:[#allocation5 + $0x30] sm:$0xff]
    %v53 = vld [vmem:[#allocation5 + $0x38] sm:$0xff]
    %v54 = vld [vmem:[#allocation5 + $0x40] sm:$0xff]
    %v55 = vld [vmem:[#allocation5 + $0x48] sm:$0xff]
    %v56 = vld [vmem:[#allocation5 + $0x50] sm:$0xff]
    %v57 = vld [vmem:[#allocation5 + $0x58] sm:$0xff]
    %v58 = vld [vmem:[#allocation5 + $0x60] sm:$0xff]
    %v59 = vld [vmem:[#allocation5 + $0x68] sm:$0xff]
    %v60 = vld [vmem:[#allocation5 + $0x70] sm:$0xff]
    %v61 = vld [vmem:[#allocation5 + $0x78] sm:$0xff]
    %v62 = vld [vmem:[%s2] sm:$0x1]
    %v64 = vperm.slane %v62, 0
    %66 = vmatpush.xpose.msra.mxu0 %v61
    %67 = vmatpush.xpose.msra.mxu0 %v60
    %68 = vmatpush.xpose.msra.mxu0 %v59
    %69 = vmatpush.xpose.msra.mxu0 %v58
    %70 = vmatpush.xpose.msra.mxu0 %v57
    %71 = vmatpush.xpose.msra.mxu0 %v56
    %72 = vmatpush.xpose.msra.mxu0 %v55
    %73 = vmatpush.xpose.msra.mxu0 %v54
    %74 = vmatpush.xpose.msra.mxu0 %v53
    %75 = vmatpush.xpose.msra.mxu0 %v52
    %76 = vmatpush.xpose.msra.mxu0 %v51
    %77 = vmatpush.xpose.msra.mxu0 %v50
    %78 = vmatpush.xpose.msra.mxu0 %v49
    %79 = vmatpush.xpose.msra.mxu0 %v48
    %80 = vmatpush.xpose.msra.mxu0 %v47
    %81 = vmatpush.xpose.msra.mxu0 %v46
    %82 = vmatmul.f32.gmra.mxu0 %v45
    %v83 = vpop.f32.mrf.mxu0
    %v84 = vadd.f32 %v64, %v83
    %85 = vdwg.mxu0
    %v86 = vxor.u32 %v84, 2147483648
    %v87 = vmul.f32 %v86, 1.442695
    %v88 = vpow.pop %v87
    %v89 = vadd.f32 %v88, 1.0
    %v90 = vrcp.pop %v89
    %v91 = vmul.f32 %v89, %v90
    %v92 = vsub.f32 1.0, %v91
    %v93 = vmul.f32 %v90, %v92
    %v94 = vadd.f32 %v90, %v93
    %vm95 = vweird.f32 %v89
    %vm96 = vweird.f32 %v90
    %vm97 = vmor %vm95, %vm96
    %v98 = vsel %vm97, %v90, %v94
    %v99 = vand.u32 2147483647, %v89
    %vm100 = vcmp.eq.f32.partialorder %v99, 8.507059e+37
    %v101 = vand.u32 %v89, 2147483648
    %v102 = vor.u32 1.1754944e-38, %v101
    %v103 = vsel %vm100, %v102, %v98
    %v104 = vmul.f32 1.0, %v103
    %105 = vst [vmem:[#allocation7] sm:$0xff] %v104
    // Predicated region
    $region22: #{tpu_custom_call.1} parent=1 // pred_check
      _
    $region23: #{tpu_custom_call.1} parent=1 // pred_check_branch
      %107 = sbr.rel (0) target = $region25
    $region24: #{tpu_custom_call.1} parent=1 // pred_region
      %109 = vsyncadd [#allocation4], 0
      %s111 = sshll.u32 [#allocation7], 4
      %s112 = int_to_ptr.vmem [resolvable:$true] %s111
      %s113 = sshll.u32 %s3, 4
      %s114 = int_to_ptr.hbm [resolvable:$true] %s113
      %116 = dma.vmem_to_hbm [thread:$0]  %s112, 128, %s114, [#allocation4]
    $region25: #{tpu_custom_call.1} parent=1 // pred_fallthru
      _
    // Predicated region
    $region26: #{tpu_custom_call.1} parent=1 // pred_check
      _
    $region27: #{tpu_custom_call.1} parent=1 // pred_check_branch
      %118 = sbr.rel (0) target = $region29
    $region28: #{tpu_custom_call.1} parent=1 // pred_region
      %120 = dma.done [#allocation4], 128
    $region29: #{tpu_custom_call.1} parent=1 // pred_fallthru
      _
    %121 = vsyncpa [#allocation3], 1
    %122 = vsyncpa [#allocation6], 1
    %123 = vsyncpa [#allocation4], 1

</llo_original>
